<compile_context>
chip_gen: v5e
topology: v5e:2x2
jax: 0.10.0
libtpu: 0.0.40
codegen_flags: <defaults>
</compile_context>

<pallas_src>
import functools

import jax
import jax.numpy as jnp
from jax.experimental import pallas as pl
from jax.experimental.pallas import tpu as pltpu

_LANES = 128
_SUBLANES = 8


def _attention_loss_kernel(*refs, num_heads, tile_rows, tiles_per_split,
                           last_block, tail_chunks, need_skip):
    head_refs = refs[:num_heads]
    o_ref = refs[num_heads]          # (1, 8, 128) resident partial-sum block (per split)

    p = pl.program_id(0)
    k = pl.program_id(1)

    @pl.when(k == 0)
    def _():
        o_ref[...] = jnp.zeros_like(o_ref)

    inv_h = jnp.float32(1.0 / num_heads)

    def chunk_contrib(c):
        # One (8, 128) vreg-height chunk per head; all math stays in vregs.
        base = c * _SUBLANES
        if not isinstance(base, int):
            base = pl.multiple_of(base, _SUBLANES)
        xs = [r[pl.ds(base, _SUBLANES), :].astype(jnp.float32) for r in head_refs]
        s = xs[0]
        for x in xs[1:]:
            s = s + x
        m = s * inv_h
        d = xs[0] - m
        con = d * d
        for x in xs[1:]:
            d = x - m
            con = con + d * d
        return con

    def accumulate(n_chunks):
        # n_chunks is a static Python int >= 1.
        total = chunk_contrib(0)     # first chunk initializes (no zero-fill + add)
        if n_chunks > 1:
            total = jax.lax.fori_loop(
                1, n_chunks,
                lambda c, acc: acc + chunk_contrib(c),
                total,
                unroll=min(8, n_chunks - 1),
            )
        # One resident-block read-modify-write per grid step.
        o_ref[...] += total[None, :, :]

    n_chunks = tile_rows // _SUBLANES
    blk = p * tiles_per_split + k
    tail_ragged = tail_chunks != n_chunks

    if not tail_ragged and not need_skip:
        accumulate(n_chunks)
    else:
        full_cond = (blk < last_block) if tail_ragged else (blk <= last_block)

        @pl.when(full_cond)
        def _():
            accumulate(n_chunks)

        if tail_ragged:
            # Tail block: process only the statically known valid chunks
            # (rows is a multiple of 8, so no elementwise mask is needed).
            @pl.when(blk == last_block)
            def _():
                accumulate(tail_chunks)


def _default_num_splits():
    # The leading "parallel" grid axis only pays off on 2-TensorCore chips
    # (v7x); on single-TC v5e/v6e it is a sequential loop plus extra overhead.
    try:
        kind = jax.devices()[0].device_kind.lower()
    except Exception:
        return 1
    return 2 if "v7" in kind else 1


def _vmem_capacity_bytes():
    cap = 64 << 20   # conservative default (v7x: 64 MiB/TC; v5e/v6e: 128 MiB)
    try:
        info = pltpu.get_tpu_info()
        cap = int(getattr(info, "vmem_capacity_bytes", cap))
    except Exception:
        pass
    return max(cap, 32 << 20)


def attention_loss(heads, *, max_tile_rows=None, num_splits=None):
    """heads: list of same-shaped arrays (one per attention head), any float dtype.

    Returns scalar f32 loss = mean over head-pairs of MSE(heads[i], heads[j]),
    matching the PyTorch AttentionLoss.forward semantics.
    """
    num_heads = len(heads)
    if num_heads <= 1:
        return jnp.zeros((), jnp.float32)

    shape = heads[0].shape
    assert all(h.shape == shape for h in heads), "all heads must share a shape"

    elems = int(heads[0].size)
    itemsizes = [jnp.dtype(h.dtype).itemsize for h in heads]
    bytes_per_row = _LANES * sum(itemsizes)      # one 128-lane row, all heads
    max_itemsize = max(itemsizes)

    # Flatten in native dtype; zero-pad to a multiple of 8*128 elements only if
    # needed (identical pad across heads -> zero centered contribution; the
    # denominator uses the unpadded `elems`).
    flat = [jnp.reshape(h, (-1,)) for h in heads]
    chunk_elems = _SUBLANES * _LANES
    rem = elems % chunk_elems
    if rem:
        flat = [jnp.pad(f, (0, chunk_elems - rem)) for f in flat]
    rows = flat[0].shape[0] // _LANES            # always a multiple of 8
    xs = [jnp.reshape(f, (rows, _LANES)) for f in flat]

    # Tile size: dtype-aware target (~1 MiB per head per step) capped so that
    # double-buffered inputs stay within ~1/4 of this generation's VMEM.
    if max_tile_rows is None:
        max_tile_rows = (1 << 20) // (_LANES * max_itemsize)
    vmem_cap = _vmem_capacity_bytes()
    cap_rows = (vmem_cap // 4) // (2 * bytes_per_row)
    tile_rows = max(_SUBLANES, min(int(max_tile_rows), int(cap_rows)))
    tile_rows = (tile_rows // _SUBLANES) * _SUBLANES
    tile_rows = min(tile_rows, rows)

    total_tiles = -(-rows // tile_rows)
    if num_splits is None:
        num_splits = _default_num_splits()
    num_splits = max(1, min(int(num_splits), total_tiles))
    tiles_per_split = -(-total_tiles // num_splits)
    last_block = total_tiles - 1
    need_skip = num_splits * tiles_per_split > total_tiles
    tail_rows = rows - last_block * tile_rows    # in (0, tile_rows], multiple of 8

    def in_index_map(p, k):
        blk = p * tiles_per_split + k
        if need_skip:
            blk = jnp.minimum(blk, last_block)   # never issue a fully OOB block
        return (blk, 0)

    in_buf_bytes = 2 * tile_rows * bytes_per_row          # double-buffered inputs
    vmem_limit = int(min(vmem_cap, max(2 * in_buf_bytes + (4 << 20), 16 << 20)))

    kernel = functools.partial(
        _attention_loss_kernel,
        num_heads=num_heads,
        tile_rows=tile_rows,
        tiles_per_split=tiles_per_split,
        last_block=last_block,
        tail_chunks=tail_rows // _SUBLANES,
        need_skip=need_skip,
    )

    partials = pl.pallas_call(
        kernel,
        out_shape=jax.ShapeDtypeStruct((num_splits, _SUBLANES, _LANES), jnp.float32),
        grid_spec=pltpu.PrefetchScalarGridSpec(
            num_scalar_prefetch=0,
            grid=(num_splits, tiles_per_split),
            in_specs=[pl.BlockSpec((tile_rows, _LANES), in_index_map)
                      for _ in range(num_heads)],
            out_specs=pl.BlockSpec((1, _SUBLANES, _LANES), lambda p, k: (p, 0, 0)),
        ),
        compiler_params=pltpu.CompilerParams(
            dimension_semantics=("parallel", "arbitrary"),
            vmem_limit_bytes=vmem_limit,
        ),
    )(*xs)

    # Single tiny cross-lane reduction + scaling outside the kernel.
    # sum_{i<j}(xi - xj)^2 = H * sum_i (xi - mean)^2  ->  scale = H / (cnt * elems).
    cnt = num_heads * (num_heads - 1) // 2
    scale = float(num_heads) / (float(cnt) * float(elems))
    return jnp.sum(partials) * jnp.float32(scale)


def _reference_attention_loss(heads):
    num_heads = len(heads)
    if num_heads <= 1:
        return jnp.zeros((), jnp.float32)
    loss = 0.0
    cnt = 0
    for i in range(num_heads - 1):
        for j in range(i + 1, num_heads):
            loss = loss + jnp.mean(
                (heads[i].astype(jnp.float32) - heads[j].astype(jnp.float32)) ** 2
            )
            cnt += 1
    return loss / cnt


if __name__ == "__main__":
    # Test 1: matches the PyTorch usage — 4 attention heads, each (B, C, H, W).
    num_heads = 4
    head_shape = (2, 4, 16, 16)
    keys = jax.random.split(jax.random.PRNGKey(0), num_heads)
    heads = [jax.random.normal(k, head_shape, dtype=jnp.float32) for k in keys]

    loss = jax.block_until_ready(attention_loss(heads))
    ref = jax.block_until_ready(_reference_attention_loss(heads))
    assert jnp.allclose(loss, ref, rtol=1e-5, atol=1e-6), (loss, ref)

    # Test 2: multi-tile grid, forced 2-way split, uneven split (skipped block)
    # and ragged tail: 5120 elems/head -> 40 rows, tile_rows=16 -> 3 tiles.
    heads2 = [jax.random.normal(k, (2, 5, 16, 32), dtype=jnp.float32)
              for k in jax.random.split(jax.random.PRNGKey(1), 3)]
    loss2 = jax.block_until_ready(attention_loss(heads2, max_tile_rows=16, num_splits=2))
    ref2 = jax.block_until_ready(_reference_attention_loss(heads2))
    assert jnp.allclose(loss2, ref2, rtol=1e-5, atol=1e-6), (loss2, ref2)

    # Test 3: element count not a multiple of 8*128 (3200 -> zero-padded to 4096)
    # plus a ragged tail block (rows=32, tile_rows=24) and a 2-way split.
    heads3 = [jax.random.normal(k, (2, 4, 20, 20), dtype=jnp.float32)
              for k in jax.random.split(jax.random.PRNGKey(2), 3)]
    loss3 = jax.block_until_ready(attention_loss(heads3, max_tile_rows=24, num_splits=2))
    ref3 = jax.block_until_ready(_reference_attention_loss(heads3))
    assert jnp.allclose(loss3, ref3, rtol=1e-5, atol=1e-6), (loss3, ref3)

    # Test 4: native bf16 inputs — no wrapper upcast; per-chunk cast in-kernel.
    heads4 = [h.astype(jnp.bfloat16) for h in heads]
    loss4 = jax.block_until_ready(attention_loss(heads4))
    ref4 = jax.block_until_ready(_reference_attention_loss(heads4))
    assert jnp.allclose(loss4, ref4, rtol=1e-4, atol=1e-5), (loss4, ref4)

    print("KERNEL_OK")
</pallas_src>

<mosaic_0001>
module attributes {stable_mosaic.version = 11 : i64} {
  func.func @_attention_loss_kernel(%arg0: i32, %arg1: i32, %arg2: memref<16x128xf32, #tpu.memory_space<vmem>>, %arg3: memref<16x128xf32, #tpu.memory_space<vmem>>, %arg4: memref<16x128xf32, #tpu.memory_space<vmem>>, %arg5: memref<16x128xf32, #tpu.memory_space<vmem>>, %arg6: memref<1x8x128xf32, #tpu.memory_space<vmem>>) attributes {dimension_semantics = [#tpu.dimension_semantics<parallel>, #tpu.dimension_semantics<arbitrary>], iteration_bounds = array<i64: 1, 1>, scalar_prefetch = 0 : i64, scratch_operands = 0 : i64, tpu.core_type = #tpu.core_type<tc>, window_params = [{transform_indices = @transform_0, window_bounds = array<i64: 16, 128>}, {transform_indices = @transform_1, window_bounds = array<i64: 16, 128>}, {transform_indices = @transform_2, window_bounds = array<i64: 16, 128>}, {transform_indices = @transform_3, window_bounds = array<i64: 16, 128>}, {transform_indices = @transform_4, window_bounds = array<i64: 1, 8, 128>}]} {
    %c0_i32 = arith.constant 0 : i32
    %0 = arith.cmpi eq, %arg1, %c0_i32 : i32
    %1 = arith.extui %0 : i1 to i32
    %c0_i32_0 = arith.constant 0 : i32
    %2 = arith.cmpi ne, %1, %c0_i32_0 : i32
    scf.if %2 {
      %cst_20 = arith.constant 0.000000e+00 : f32
      %54 = vector.broadcast %cst_20 : f32 to vector<1x8x128xf32>
      %c0_21 = arith.constant 0 : index
      %c0_22 = arith.constant 0 : index
      %c0_23 = arith.constant 0 : index
      %55 = vector.load %arg6[%c0_21, %c0_22, %c0_23] : memref<1x8x128xf32, #tpu.memory_space<vmem>>, vector<1x8x128xf32>
      tpu.vector_store %arg6[%c0_21, %c0_22, %c0_23], %54 {strides = array<i32>} : memref<1x8x128xf32, #tpu.memory_space<vmem>>, vector<1x8x128xf32>,
    } else {
    }
    %c0 = arith.constant 0 : index
    %c0_1 = arith.constant 0 : index
    %3 = vector.load %arg2[%c0, %c0_1] : memref<16x128xf32, #tpu.memory_space<vmem>>, vector<8x128xf32>
    %c0_2 = arith.constant 0 : index
    %c0_3 = arith.constant 0 : index
    %4 = vector.load %arg3[%c0_2, %c0_3] : memref<16x128xf32, #tpu.memory_space<vmem>>, vector<8x128xf32>
    %c0_4 = arith.constant 0 : index
    %c0_5 = arith.constant 0 : index
    %5 = vector.load %arg4[%c0_4, %c0_5] : memref<16x128xf32, #tpu.memory_space<vmem>>, vector<8x128xf32>
    %c0_6 = arith.constant 0 : index
    %c0_7 = arith.constant 0 : index
    %6 = vector.load %arg5[%c0_6, %c0_7] : memref<16x128xf32, #tpu.memory_space<vmem>>, vector<8x128xf32>
    %7 = arith.addf %3, %4 : vector<8x128xf32>
    %8 = arith.addf %7, %5 : vector<8x128xf32>
    %9 = arith.addf %8, %6 : vector<8x128xf32>
    %cst = arith.constant 2.500000e-01 : f32
    %10 = vector.broadcast %cst : f32 to vector<8x128xf32>
    %11 = arith.mulf %9, %10 : vector<8x128xf32>
    %12 = arith.subf %3, %11 : vector<8x128xf32>
    %13 = arith.mulf %12, %12 : vector<8x128xf32>
    %14 = arith.subf %4, %11 : vector<8x128xf32>
    %15 = arith.mulf %14, %14 : vector<8x128xf32>
    %16 = arith.addf %13, %15 : vector<8x128xf32>
    %17 = arith.subf %5, %11 : vector<8x128xf32>
    %18 = arith.mulf %17, %17 : vector<8x128xf32>
    %19 = arith.addf %16, %18 : vector<8x128xf32>
    %20 = arith.subf %6, %11 : vector<8x128xf32>
    %21 = arith.mulf %20, %20 : vector<8x128xf32>
    %22 = arith.addf %19, %21 : vector<8x128xf32>
    %cst_8 = arith.constant 2.500000e-01 : f32
    %c1_i32 = arith.constant 1 : i32
    %c8_i32 = arith.constant 8 : i32
    %23 = arith.muli %c1_i32, %c8_i32 : i32
    %24 = tpu.assume_multiple %23, 8 : i32
    %25 = arith.index_cast %24 : i32 to index
    %c0_9 = arith.constant 0 : index
    %26 = vector.load %arg2[%25, %c0_9] : memref<16x128xf32, #tpu.memory_space<vmem>>, vector<8x128xf32>
    %27 = arith.index_cast %24 : i32 to index
    %c0_10 = arith.constant 0 : index
    %28 = vector.load %arg3[%27, %c0_10] : memref<16x128xf32, #tpu.memory_space<vmem>>, vector<8x128xf32>
    %29 = arith.index_cast %24 : i32 to index
    %c0_11 = arith.constant 0 : index
    %30 = vector.load %arg4[%29, %c0_11] : memref<16x128xf32, #tpu.memory_space<vmem>>, vector<8x128xf32>
    %31 = arith.index_cast %24 : i32 to index
    %c0_12 = arith.constant 0 : index
    %32 = vector.load %arg5[%31, %c0_12] : memref<16x128xf32, #tpu.memory_space<vmem>>, vector<8x128xf32>
    %33 = arith.addf %26, %28 : vector<8x128xf32>
    %34 = arith.addf %33, %30 : vector<8x128xf32>
    %35 = arith.addf %34, %32 : vector<8x128xf32>
    %36 = vector.broadcast %cst_8 : f32 to vector<8x128xf32>
    %37 = arith.mulf %35, %36 : vector<8x128xf32>
    %38 = arith.subf %26, %37 : vector<8x128xf32>
    %39 = arith.mulf %38, %38 : vector<8x128xf32>
    %40 = arith.subf %28, %37 : vector<8x128xf32>
    %41 = arith.mulf %40, %40 : vector<8x128xf32>
    %42 = arith.addf %39, %41 : vector<8x128xf32>
    %43 = arith.subf %30, %37 : vector<8x128xf32>
    %44 = arith.mulf %43, %43 : vector<8x128xf32>
    %45 = arith.addf %42, %44 : vector<8x128xf32>
    %46 = arith.subf %32, %37 : vector<8x128xf32>
    %47 = arith.mulf %46, %46 : vector<8x128xf32>
    %48 = arith.addf %45, %47 : vector<8x128xf32>
    %49 = arith.addf %22, %48 : vector<8x128xf32>
    %c1_i32_13 = arith.constant 1 : i32
    %c0_14 = arith.constant 0 : index
    %c0_15 = arith.constant 0 : index
    %c0_16 = arith.constant 0 : index
    %50 = vector.load %arg6[%c0_14, %c0_15, %c0_16] : memref<1x8x128xf32, #tpu.memory_space<vmem>>, vector<1x8x128xf32>
    %51 = vector.shape_cast %49 : vector<8x128xf32> to vector<1x8x128xf32>
    %52 = arith.addf %50, %51 : vector<1x8x128xf32>
    %c0_17 = arith.constant 0 : index
    %c0_18 = arith.constant 0 : index
    %c0_19 = arith.constant 0 : index
    %53 = vector.load %arg6[%c0_17, %c0_18, %c0_19] : memref<1x8x128xf32, #tpu.memory_space<vmem>>, vector<1x8x128xf32>
    tpu.vector_store %arg6[%c0_17, %c0_18, %c0_19], %52 {strides = array<i32>} : memref<1x8x128xf32, #tpu.memory_space<vmem>>, vector<1x8x128xf32>,
    return
  }
  func.func @transform_0(%arg0: i32, %arg1: i32) -> (i32, i32) {
    %c1_i32 = arith.constant 1 : i32
    %0 = arith.muli %arg0, %c1_i32 : i32
    %1 = arith.addi %0, %arg1 : i32
    %c0_i32 = arith.constant 0 : i32
    %c0_i32_0 = arith.constant 0 : i32
    return %1, %c0_i32 : i32, i32
  }
  func.func @transform_1(%arg0: i32, %arg1: i32) -> (i32, i32) {
    %c1_i32 = arith.constant 1 : i32
    %0 = arith.muli %arg0, %c1_i32 : i32
    %1 = arith.addi %0, %arg1 : i32
    %c0_i32 = arith.constant 0 : i32
    %c0_i32_0 = arith.constant 0 : i32
    return %1, %c0_i32 : i32, i32
  }
  func.func @transform_2(%arg0: i32, %arg1: i32) -> (i32, i32) {
    %c1_i32 = arith.constant 1 : i32
    %0 = arith.muli %arg0, %c1_i32 : i32
    %1 = arith.addi %0, %arg1 : i32
    %c0_i32 = arith.constant 0 : i32
    %c0_i32_0 = arith.constant 0 : i32
    return %1, %c0_i32 : i32, i32
  }
  func.func @transform_3(%arg0: i32, %arg1: i32) -> (i32, i32) {
    %c1_i32 = arith.constant 1 : i32
    %0 = arith.muli %arg0, %c1_i32 : i32
    %1 = arith.addi %0, %arg1 : i32
    %c0_i32 = arith.constant 0 : i32
    %c0_i32_0 = arith.constant 0 : i32
    return %1, %c0_i32 : i32, i32
  }
  func.func @transform_4(%arg0: i32, %arg1: i32) -> (i32, i32, i32) {
    %c0_i32 = arith.constant 0 : i32
    %c0_i32_0 = arith.constant 0 : i32
    %c0_i32_1 = arith.constant 0 : i32
    return %arg0, %c0_i32, %c0_i32_0 : i32, i32, i32
  }
}

</mosaic_0001>

<llo_original>
// kernel: tpu_custom_call.1
$region0: #{tpu_custom_call.1}
  #allocation0 [shape = 'u32[]', space=smem, size = 0x4, offset = 0x4, fixed_abs, tag = 'smem constant byte address 0x4 - core index']
  #allocation1 [shape = 'u32[72,128]{1,0:T(1,128)}', space=vmem, size = 0x9000, scoped, tag = 'internal scratch']
  %s0 = inlined_call_operand.hbm [shape: f32[16,128], index: 0, kind: input, shape index: {}]
  %s1 = inlined_call_operand.hbm [shape: f32[16,128], index: 1, kind: input, shape index: {}]
  %s2 = inlined_call_operand.hbm [shape: f32[16,128], index: 2, kind: input, shape index: {}]
  %s3 = inlined_call_operand.hbm [shape: f32[16,128], index: 3, kind: input, shape index: {}]
  %s4 = inlined_call_operand.hbm [shape: f32[1,8,128], index: 4, kind: output, shape index: {}]
  %s5 = sld [smem:[#allocation0]]
  $region46: #{tpu_custom_call.1} parent=0
    _
  %s7 = ssub.s32 1, %s5
  %s8 = scalar_select 0, %s7, %s5
  $region1: #{tpu_custom_call.1} parent=0
    #allocation2 [shape = 'u8[8192]{0}', space=vmem, size = 0x2000, scoped, tag = 'input window, operand 0, single buffered']
    #allocation3 [shape = 's32[1]{0}', space=sflag, size = 0x4, scoped, tag = 'scoped memory for tpu_custom_call.1']
    #allocation4 [shape = 's32[1]{0}', space=sflag, size = 0x4, scoped, tag = 'scoped memory for tpu_custom_call.1']
    #allocation5 [shape = 'u8[8192]{0}', space=vmem, size = 0x2000, scoped, tag = 'input window, operand 1, single buffered']
    #allocation6 [shape = 's32[1]{0}', space=sflag, size = 0x4, scoped, tag = 'scoped memory for tpu_custom_call.1']
    #allocation7 [shape = 'u8[8192]{0}', space=vmem, size = 0x2000, scoped, tag = 'input window, operand 2, single buffered']
    #allocation8 [shape = 'u8[8192]{0}', space=vmem, size = 0x2000, scoped, tag = 'input window, operand 3, single buffered']
    #allocation9 [shape = 's32[1]{0}', space=sflag, size = 0x4, scoped, tag = 'scoped memory for tpu_custom_call.1']
    #allocation10 [shape = 'u8[4096]{0}', space=vmem, size = 0x1000, scoped, tag = 'output window, operand 0, single buffered']
    %9 = vsyncpa [#allocation3], 0
    %10 = vsyncpa [#allocation6], 0
    %11 = vsyncpa [#allocation9], 0
    %12 = vsyncpa [#allocation4], 0
    // Predicated region
    $region2: #{tpu_custom_call.1} parent=1 // pred_check
      _
    $region3: #{tpu_custom_call.1} parent=1 // pred_check_branch
      %14 = sbr.rel (0) target = $region5
    $region4: #{tpu_custom_call.1} parent=1 // pred_region
      %s15 = sadd.s32 0, 0
      %s16 = smul.u32 2, %s15
      %18 = vsyncadd [#allocation3], 0
      %s19 = smul.addr %s16, 8
      %s20 = scalar_lea.hbm %s0, %s19
      %s21 = sshll.u32 %s20, 4
      %s22 = int_to_ptr.hbm [resolvable:$true] %s21
      %s23 = sshll.u32 [#allocation2], 4
      %s24 = int_to_ptr.vmem [resolvable:$true] %s23
      %29 = dma.hbm_to_vmem [thread:$0]  %s22, 256, %s24, [#allocation3], 128, 128, 8
    $region5: #{tpu_custom_call.1} parent=1 // pred_fallthru
      _
    // Predicated region
    $region6: #{tpu_custom_call.1} parent=1 // pred_check
      _
    $region7: #{tpu_custom_call.1} parent=1 // pred_check_branch
      %31 = sbr.rel (0) target = $region9
    $region8: #{tpu_custom_call.1} parent=1 // pred_region
      %s32 = sadd.s32 0, 0
      %s33 = smul.u32 2, %s32
      %35 = vsyncadd [#allocation6], 0
      %s36 = smul.addr %s33, 8
      %s37 = scalar_lea.hbm %s1, %s36
      %s38 = sshll.u32 %s37, 4
      %s39 = int_to_ptr.hbm [resolvable:$true] %s38
      %s40 = sshll.u32 [#allocation5], 4
      %s41 = int_to_ptr.vmem [resolvable:$true] %s40
      %46 = dma.hbm_to_vmem [thread:$0]  %s39, 256, %s41, [#allocation6], 128, 128, 8
    $region9: #{tpu_custom_call.1} parent=1 // pred_fallthru
      _
    // Predicated region
    $region10: #{tpu_custom_call.1} parent=1 // pred_check
      _
    $region11: #{tpu_custom_call.1} parent=1 // pred_check_branch
      %48 = sbr.rel (0) target = $region13
    $region12: #{tpu_custom_call.1} parent=1 // pred_region
      %s49 = sadd.s32 0, 0
      %s50 = smul.u32 2, %s49
      %52 = vsyncadd [#allocation6], 0
      %s53 = smul.addr %s50, 8
      %s54 = scalar_lea.hbm %s2, %s53
      %s55 = sshll.u32 %s54, 4
      %s56 = int_to_ptr.hbm [resolvable:$true] %s55
      %s57 = sshll.u32 [#allocation7], 4
      %s58 = int_to_ptr.vmem [resolvable:$true] %s57
      %63 = dma.hbm_to_vmem [thread:$0]  %s56, 256, %s58, [#allocation6], 128, 128, 8
    $region13: #{tpu_custom_call.1} parent=1 // pred_fallthru
      _
    // Predicated region
    $region14: #{tpu_custom_call.1} parent=1 // pred_check
      _
    $region15: #{tpu_custom_call.1} parent=1 // pred_check_branch
      %65 = sbr.rel (0) target = $region17
    $region16: #{tpu_custom_call.1} parent=1 // pred_region
      %s66 = sadd.s32 0, 0
      %s67 = smul.u32 2, %s66
      %69 = vsyncadd [#allocation9], 0
      %s70 = smul.addr %s67, 8
      %s71 = scalar_lea.hbm %s3, %s70
      %s72 = sshll.u32 %s71, 4
      %s73 = int_to_ptr.hbm [resolvable:$true] %s72
      %s74 = sshll.u32 [#allocation8], 4
      %s75 = int_to_ptr.vmem [resolvable:$true] %s74
      %80 = dma.hbm_to_vmem [thread:$0]  %s73, 256, %s75, [#allocation9], 128, 128, 8
    $region17: #{tpu_custom_call.1} parent=1 // pred_fallthru
      _
    // Predicated region
    $region18: #{tpu_custom_call.1} parent=1 // pred_check
      _
    $region19: #{tpu_custom_call.1} parent=1 // pred_check_branch
      %82 = sbr.rel (0) target = $region21
    $region20: #{tpu_custom_call.1} parent=1 // pred_region
      %84 = dma.done [#allocation3], 256
    $region21: #{tpu_custom_call.1} parent=1 // pred_fallthru
      _
    // Predicated region
    $region22: #{tpu_custom_call.1} parent=1 // pred_check
      _
    $region23: #{tpu_custom_call.1} parent=1 // pred_check_branch
      %86 = sbr.rel (0) target = $region25
    $region24: #{tpu_custom_call.1} parent=1 // pred_region
      %88 = dma.done [#allocation6], 256
    $region25: #{tpu_custom_call.1} parent=1 // pred_fallthru
      _
    // Predicated region
    $region26: #{tpu_custom_call.1} parent=1 // pred_check
      _
    $region27: #{tpu_custom_call.1} parent=1 // pred_check_branch
      %90 = sbr.rel (0) target = $region29
    $region28: #{tpu_custom_call.1} parent=1 // pred_region
      %92 = dma.done [#allocation6], 256
    $region29: #{tpu_custom_call.1} parent=1 // pred_fallthru
      _
    // Predicated region
    $region30: #{tpu_custom_call.1} parent=1 // pred_check
      _
    $region31: #{tpu_custom_call.1} parent=1 // pred_check_branch
      %94 = sbr.rel (0) target = $region33
    $region32: #{tpu_custom_call.1} parent=1 // pred_region
      %96 = dma.done [#allocation9], 256
    $region33: #{tpu_custom_call.1} parent=1 // pred_fallthru
      _
    %s97 = sadd.s32 0, 0
    %s98 = smul.u32 2, %s97
    %s99 = sadd.s32 0, 0
    %s100 = smul.u32 2, %s99
    %s101 = sadd.s32 0, 0
    %s102 = smul.u32 2, %s101
    %s103 = sadd.s32 0, 0
    %s104 = smul.u32 2, %s103
    %p105 = scmp.eq.s32.totalorder 0, 0
    // Predicated region
    $region34: #{tpu_custom_call.1} parent=1 // pred_check
      %p106 = pneg %p105
    $region35: #{tpu_custom_call.1} parent=1 // pred_check_branch
      %108 = sbr.rel (%p106) target = $region37
    $region36: #{tpu_custom_call.1} parent=1 // pred_region
      %109 = vst [vmem:[#allocation10] sm:$0xff] 0.0
    $region37: #{tpu_custom_call.1} parent=1 // pred_fallthru
      _
    %v110 = vld [vmem:[#allocation2] sm:$0xff]
    %v111 = vld [vmem:[#allocation5] sm:$0xff]
    %v112 = vld [vmem:[#allocation7] sm:$0xff]
    %v113 = vld [vmem:[#allocation8] sm:$0xff]
    %v114 = vadd.f32 %v110, %v111
    %v115 = vadd.f32 %v114, %v112
    %v116 = vadd.f32 %v115, %v113
    %v117 = vmul.f32 %v116, 0.25
    %v118 = vsub.f32 %v110, %v117
    %v119 = vmul.f32 %v118, %v118
    %v120 = vsub.f32 %v111, %v117
    %v121 = vmul.f32 %v120, %v120
    %v122 = vadd.f32 %v119, %v121
    %v123 = vsub.f32 %v112, %v117
    %v124 = vmul.f32 %v123, %v123
    %v125 = vadd.f32 %v122, %v124
    %v126 = vsub.f32 %v113, %v117
    %v127 = vmul.f32 %v126, %v126
    %v128 = vadd.f32 %v125, %v127
    %s129 = scalar_lea.vmem [#allocation2], 8
    %v130 = vld [vmem:[%s129] sm:$0xff]
    %s131 = scalar_lea.vmem [#allocation5], 8
    %v132 = vld [vmem:[%s131] sm:$0xff]
    %s133 = scalar_lea.vmem [#allocation7], 8
    %v134 = vld [vmem:[%s133] sm:$0xff]
    %s135 = scalar_lea.vmem [#allocation8], 8
    %v136 = vld [vmem:[%s135] sm:$0xff]
    %v137 = vadd.f32 %v130, %v132
    %v138 = vadd.f32 %v137, %v134
    %v139 = vadd.f32 %v138, %v136
    %v140 = vmul.f32 %v139, 0.25
    %v141 = vsub.f32 %v130, %v140
    %v142 = vmul.f32 %v141, %v141
    %v143 = vsub.f32 %v132, %v140
    %v144 = vmul.f32 %v143, %v143
    %v145 = vadd.f32 %v142, %v144
    %v146 = vsub.f32 %v134, %v140
    %v147 = vmul.f32 %v146, %v146
    %v148 = vadd.f32 %v145, %v147
    %v149 = vsub.f32 %v136, %v140
    %v150 = vmul.f32 %v149, %v149
    %v151 = vadd.f32 %v148, %v150
    %v152 = vadd.f32 %v128, %v151
    %v153 = vld [vmem:[#allocation10] sm:$0xff]
    %v154 = vadd.f32 %v153, %v152
    %155 = vst [vmem:[#allocation10] sm:$0xff] %v154
    // Predicated region
    $region38: #{tpu_custom_call.1} parent=1 // pred_check
      _
    $region39: #{tpu_custom_call.1} parent=1 // pred_check_branch
      %157 = sbr.rel (0) target = $region41
    $region40: #{tpu_custom_call.1} parent=1 // pred_region
      %159 = vsyncadd [#allocation4], 0
      %s161 = sshll.u32 [#allocation10], 4
      %s162 = int_to_ptr.vmem [resolvable:$true] %s161
      %s163 = sshll.u32 %s4, 4
      %s164 = int_to_ptr.hbm [resolvable:$true] %s163
      %166 = dma.vmem_to_hbm [thread:$0]  %s162, 128, %s164, [#allocation4]
    $region41: #{tpu_custom_call.1} parent=1 // pred_fallthru
      _
    // Predicated region
    $region42: #{tpu_custom_call.1} parent=1 // pred_check
      _
    $region43: #{tpu_custom_call.1} parent=1 // pred_check_branch
      %168 = sbr.rel (0) target = $region45
    $region44: #{tpu_custom_call.1} parent=1 // pred_region
      %170 = dma.done [#allocation4], 128
    $region45: #{tpu_custom_call.1} parent=1 // pred_fallthru
      _
    %171 = vsyncpa [#allocation3], 1
    %172 = vsyncpa [#allocation6], 1
    %173 = vsyncpa [#allocation9], 1
    %174 = vsyncpa [#allocation4], 1

</llo_original>
